<compile_context>
chip_gen: v6e
topology: v6e:2x2x1
jax: 0.10.0
libtpu: 0.0.40
codegen_flags: <defaults>
</compile_context>

<pallas_src>
import functools

import jax
import jax.numpy as jnp
from jax.experimental import pallas as pl
from jax.experimental.pallas import tpu as pltpu


def _round_up(x: int, m: int) -> int:
    return ((x + m - 1) // m) * m


def _gru_cell_kernel(
    h_ref,       # (TB, H)    previous users_embeddings_history (f32)
    items_ref,   # (TB, H)    items_embeddings_minus            (f32)
    time_ref,    # (TB, T)    time_diffs_tensor                 (f32)
    w_ii_ref,    # (H, 3*Hp)  gate-padded W_ih^T, items rows    (bf16)
    w_it_ref,    # (T, 3*Hp)  gate-padded W_ih^T, time rows     (bf16)
    w_hh_ref,    # (H, 3*Hp)  gate-padded W_hh^T                (bf16)
    b_i_ref,     # (1, 3*Hp)  [b_ih_r + b_hh_r | b_ih_z + b_hh_z | b_ih_n]  (f32)
    b_hn_ref,    # (1, Hp)    b_hh_n                            (f32)
    out_ref,     # (TB, H)    new users_embeddings
    *,
    H: int,
    Hp: int,
    mm_dtype,
):
    h = h_ref[...]                         # f32, reused in the blend epilogue
    hm = h.astype(mm_dtype)                # per-tile cast for the MXU
    xi = items_ref[...].astype(mm_dtype)
    xt = time_ref[...].astype(mm_dtype)

    # Input-side gates: two MXU dots replace the torch.cat (no HBM concat pass);
    # the r/z biases are pre-summed into b_i.
    gi = (
        jnp.dot(xi, w_ii_ref[...], preferred_element_type=jnp.float32)
        + jnp.dot(xt, w_it_ref[...], preferred_element_type=jnp.float32)
        + b_i_ref[...]
    )
    # Hidden-side gates.
    gh = jnp.dot(hm, w_hh_ref[...], preferred_element_type=jnp.float32)

    # Gate slabs are 128-lane aligned (Hp multiple of 128) -> no cross-lane extraction.
    r = jax.nn.sigmoid(gi[:, 0 * Hp:1 * Hp] + gh[:, 0 * Hp:1 * Hp])
    z = jax.nn.sigmoid(gi[:, 1 * Hp:2 * Hp] + gh[:, 1 * Hp:2 * Hp])
    n = jnp.tanh(gi[:, 2 * Hp:3 * Hp] + r * (gh[:, 2 * Hp:3 * Hp] + b_hn_ref[...]))

    # Blend on the real H lanes (prefix slice: shuffle-free) and store in f32.
    z_h = z[:, :H]
    out_ref[...] = ((1.0 - z_h) * n[:, :H] + z_h * h).astype(out_ref.dtype)


def prepare_gru_params(weight_ih, weight_hh, bias_ih, bias_hh, *, matmul_dtype=jnp.bfloat16):
    """One-time (model-init) weight prep: transpose, split W_ih into items/time parts,
    pad each gate to a 128-lane slab, cast to the MXU dtype, and pre-sum the r/z biases."""
    three_h, in_dim = weight_ih.shape
    H = three_h // 3
    T = in_dim - H
    Hp = _round_up(max(H, 128), 128)

    def pad_gate_cols(w_t):                     # (rows, 3H) -> (rows, 3Hp)
        rows = w_t.shape[0]
        out = jnp.zeros((rows, 3 * Hp), jnp.float32)
        for g in range(3):
            out = out.at[:, g * Hp:g * Hp + H].set(w_t[:, g * H:(g + 1) * H])
        return out.astype(matmul_dtype)

    w_ih_t = weight_ih.T.astype(jnp.float32)    # (H+T, 3H)
    w_hh_t = weight_hh.T.astype(jnp.float32)    # (H,   3H)

    w_ii_p = pad_gate_cols(w_ih_t[:H])          # (H, 3*Hp)  items rows
    w_it_p = pad_gate_cols(w_ih_t[H:])          # (T, 3*Hp)  time rows
    w_hh_p = pad_gate_cols(w_hh_t)              # (H, 3*Hp)

    b_ih = bias_ih.astype(jnp.float32)
    b_hh = bias_hh.astype(jnp.float32)
    b_i = jnp.zeros((1, 3 * Hp), jnp.float32)
    b_i = b_i.at[0, 0 * Hp:0 * Hp + H].set(b_ih[0:H] + b_hh[0:H])            # r (pre-summed)
    b_i = b_i.at[0, 1 * Hp:1 * Hp + H].set(b_ih[H:2 * H] + b_hh[H:2 * H])    # z (pre-summed)
    b_i = b_i.at[0, 2 * Hp:2 * Hp + H].set(b_ih[2 * H:3 * H])                # n (input side)
    b_hn = jnp.zeros((1, Hp), jnp.float32).at[0, :H].set(b_hh[2 * H:3 * H])  # n (hidden side)

    return w_ii_p, w_it_p, w_hh_p, b_i, b_hn


def users_history_updater(
    users_embeddings_history,   # (B, H)  f32
    items_embeddings_minus,     # (B, H)  f32
    time_diffs_tensor,          # (B, T)  f32
    w_ii_p,                     # (H, 3*Hp)  from prepare_gru_params
    w_it_p,                     # (T, 3*Hp)
    w_hh_p,                     # (H, 3*Hp)
    b_i,                        # (1, 3*Hp)
    b_hn,                       # (1, Hp)
    *,
    batch_tile: int = 1024,
):
    h = users_embeddings_history
    B, H = h.shape
    T = time_diffs_tensor.shape[1]
    Hp = w_hh_p.shape[1] // 3
    mm_dtype = w_ii_p.dtype

    TB = min(batch_tile, B)
    grid = (pl.cdiv(B, TB),)

    kernel = functools.partial(_gru_cell_kernel, H=H, Hp=Hp, mm_dtype=mm_dtype)

    return pl.pallas_call(
        kernel,
        out_shape=jax.ShapeDtypeStruct((B, H), h.dtype),
        grid=grid,
        in_specs=[
            pl.BlockSpec((TB, H), lambda i: (i, 0)),       # h          (tiled over batch)
            pl.BlockSpec((TB, H), lambda i: (i, 0)),       # items      (tiled over batch)
            pl.BlockSpec((TB, T), lambda i: (i, 0)),       # time diffs (tiled over batch)
            pl.BlockSpec((H, 3 * Hp), lambda i: (0, 0)),   # W_ih^T items part (VMEM-resident)
            pl.BlockSpec((T, 3 * Hp), lambda i: (0, 0)),   # W_ih^T time part  (VMEM-resident)
            pl.BlockSpec((H, 3 * Hp), lambda i: (0, 0)),   # W_hh^T            (VMEM-resident)
            pl.BlockSpec((1, 3 * Hp), lambda i: (0, 0)),   # pre-summed bias
            pl.BlockSpec((1, Hp), lambda i: (0, 0)),       # b_hh_n
        ],
        out_specs=pl.BlockSpec((TB, H), lambda i: (i, 0)),
        input_output_aliases={0: 0},                       # in-place history update
        compiler_params=pltpu.CompilerParams(
            dimension_semantics=("parallel",),
            vmem_limit_bytes=32 * 1024 * 1024,
        ),
    )(h, items_embeddings_minus, time_diffs_tensor, w_ii_p, w_it_p, w_hh_p, b_i, b_hn)


def _reference(h, items, tdiff, w_ih, w_hh, b_ih, b_hh):
    """Pure-JAX f32 GRUCell reference (PyTorch semantics)."""
    H = h.shape[1]
    x = jnp.concatenate([items, tdiff], axis=1)
    gi = x @ w_ih.T + b_ih
    gh = h @ w_hh.T + b_hh
    r = jax.nn.sigmoid(gi[:, :H] + gh[:, :H])
    z = jax.nn.sigmoid(gi[:, H:2 * H] + gh[:, H:2 * H])
    n = jnp.tanh(gi[:, 2 * H:] + r * gh[:, 2 * H:])
    return (1.0 - z) * n + z * h


if __name__ == "__main__":
    # Small synthetic shapes consistent with the module's forward.
    B = 8            # batch (number of interacting users)
    nodes_dim = 32   # user / item embedding dim (GRU hidden size)
    time_dim = 16    # time-feature dim

    key = jax.random.PRNGKey(0)
    k = jax.random.split(key, 7)

    users_embeddings_history = jax.random.normal(k[0], (B, nodes_dim), jnp.float32)
    items_embeddings_minus = jax.random.normal(k[1], (B, nodes_dim), jnp.float32)
    time_diffs_tensor = jax.random.normal(k[2], (B, time_dim), jnp.float32)

    # Deterministic GRUCell parameter init (uniform(-1/sqrt(H), 1/sqrt(H)), like PyTorch).
    bound = 1.0 / (nodes_dim ** 0.5)
    weight_ih = jax.random.uniform(
        k[3], (3 * nodes_dim, nodes_dim + time_dim), jnp.float32, -bound, bound)
    weight_hh = jax.random.uniform(
        k[4], (3 * nodes_dim, nodes_dim), jnp.float32, -bound, bound)
    bias_ih = jax.random.uniform(k[5], (3 * nodes_dim,), jnp.float32, -bound, bound)
    bias_hh = jax.random.uniform(k[6], (3 * nodes_dim,), jnp.float32, -bound, bound)

    # Reference first (f32 end-to-end).
    ref = _reference(
        users_embeddings_history, items_embeddings_minus, time_diffs_tensor,
        weight_ih, weight_hh, bias_ih, bias_hh,
    )

    # One-time weight prep (would live at model init in production).
    w_ii_p, w_it_p, w_hh_p, b_i, b_hn = prepare_gru_params(
        weight_ih, weight_hh, bias_ih, bias_hh, matmul_dtype=jnp.bfloat16)

    updater = jax.jit(users_history_updater)
    out = updater(
        users_embeddings_history, items_embeddings_minus, time_diffs_tensor,
        w_ii_p, w_it_p, w_hh_p, b_i, b_hn,
    )
    out = jax.block_until_ready(out)

    assert out.shape == (B, nodes_dim)
    # bf16 MXU inputs with f32 accumulation -> loosened tolerance vs the pure-f32 reference.
    assert jnp.allclose(out, ref, atol=3e-2, rtol=3e-2), (
        f"max abs err = {jnp.max(jnp.abs(out - ref))}")

    print("KERNEL_OK")
</pallas_src>

<mosaic_0001>
module attributes {stable_mosaic.version = 11 : i64} {
  func.func @_gru_cell_kernel(%arg0: i32, %arg1: memref<8x32xf32, #tpu.memory_space<vmem>>, %arg2: memref<8x32xf32, #tpu.memory_space<vmem>>, %arg3: memref<8x16xf32, #tpu.memory_space<vmem>>, %arg4: memref<32x384xbf16, #tpu.memory_space<vmem>>, %arg5: memref<16x384xbf16, #tpu.memory_space<vmem>>, %arg6: memref<32x384xbf16, #tpu.memory_space<vmem>>, %arg7: memref<1x384xf32, #tpu.memory_space<vmem>>, %arg8: memref<1x128xf32, #tpu.memory_space<vmem>>, %arg9: memref<8x32xf32, #tpu.memory_space<vmem>>) attributes {dimension_semantics = [#tpu.dimension_semantics<parallel>], iteration_bounds = array<i64: 1>, scalar_prefetch = 0 : i64, scratch_operands = 0 : i64, tpu.core_type = #tpu.core_type<tc>, window_params = [{transform_indices = @transform_0, window_bounds = array<i64: 8, 32>}, {transform_indices = @transform_1, window_bounds = array<i64: 8, 32>}, {transform_indices = @transform_2, window_bounds = array<i64: 8, 16>}, {pipeline_mode = #tpu.pipeline_mode<synchronous>, transform_indices = @transform_3, window_bounds = array<i64: 32, 384>}, {pipeline_mode = #tpu.pipeline_mode<synchronous>, transform_indices = @transform_4, window_bounds = array<i64: 16, 384>}, {pipeline_mode = #tpu.pipeline_mode<synchronous>, transform_indices = @transform_5, window_bounds = array<i64: 32, 384>}, {pipeline_mode = #tpu.pipeline_mode<synchronous>, transform_indices = @transform_6, window_bounds = array<i64: 1, 384>}, {pipeline_mode = #tpu.pipeline_mode<synchronous>, transform_indices = @transform_7, window_bounds = array<i64: 1, 128>}, {transform_indices = @transform_8, window_bounds = array<i64: 8, 32>}]} {
    %c0 = arith.constant 0 : index
    %c0_0 = arith.constant 0 : index
    %0 = vector.load %arg1[%c0, %c0_0] : memref<8x32xf32, #tpu.memory_space<vmem>>, vector<8x32xf32>
    %1 = arith.truncf %0 : vector<8x32xf32> to vector<8x32xbf16>
    %c0_1 = arith.constant 0 : index
    %c0_2 = arith.constant 0 : index
    %2 = vector.load %arg2[%c0_1, %c0_2] : memref<8x32xf32, #tpu.memory_space<vmem>>, vector<8x32xf32>
    %3 = arith.truncf %2 : vector<8x32xf32> to vector<8x32xbf16>
    %c0_3 = arith.constant 0 : index
    %c0_4 = arith.constant 0 : index
    %4 = vector.load %arg3[%c0_3, %c0_4] : memref<8x16xf32, #tpu.memory_space<vmem>>, vector<8x16xf32>
    %5 = arith.truncf %4 : vector<8x16xf32> to vector<8x16xbf16>
    %c0_5 = arith.constant 0 : index
    %c0_6 = arith.constant 0 : index
    %6 = vector.load %arg4[%c0_5, %c0_6] : memref<32x384xbf16, #tpu.memory_space<vmem>>, vector<32x384xbf16>
    %cst = arith.constant dense<0.000000e+00> : vector<8x384xf32>
    %7 = tpu.matmul %3, %6, %cst {dimension_numbers = #tpu.dot_dimension_numbers<[1], [0], [0], [1], [0, 0, 1, 1], [], []>} : vector<8x32xbf16>, vector<32x384xbf16>, vector<8x384xf32> -> vector<8x384xf32>
    %c0_7 = arith.constant 0 : index
    %c0_8 = arith.constant 0 : index
    %8 = vector.load %arg5[%c0_7, %c0_8] : memref<16x384xbf16, #tpu.memory_space<vmem>>, vector<16x384xbf16>
    %cst_9 = arith.constant dense<0.000000e+00> : vector<8x384xf32>
    %9 = tpu.matmul %5, %8, %cst_9 {dimension_numbers = #tpu.dot_dimension_numbers<[1], [0], [0], [1], [0, 0, 1, 1], [], []>} : vector<8x16xbf16>, vector<16x384xbf16>, vector<8x384xf32> -> vector<8x384xf32>
    %10 = arith.addf %7, %9 : vector<8x384xf32>
    %c0_10 = arith.constant 0 : index
    %c0_11 = arith.constant 0 : index
    %11 = vector.load %arg7[%c0_10, %c0_11] : memref<1x384xf32, #tpu.memory_space<vmem>>, vector<1x384xf32>
    %12 = vector.broadcast %11 : vector<1x384xf32> to vector<8x384xf32>
    %13 = arith.addf %10, %12 : vector<8x384xf32>
    %c0_12 = arith.constant 0 : index
    %c0_13 = arith.constant 0 : index
    %14 = vector.load %arg6[%c0_12, %c0_13] : memref<32x384xbf16, #tpu.memory_space<vmem>>, vector<32x384xbf16>
    %cst_14 = arith.constant dense<0.000000e+00> : vector<8x384xf32>
    %15 = tpu.matmul %1, %14, %cst_14 {dimension_numbers = #tpu.dot_dimension_numbers<[1], [0], [0], [1], [0, 0, 1, 1], [], []>} : vector<8x32xbf16>, vector<32x384xbf16>, vector<8x384xf32> -> vector<8x384xf32>
    %16 = vector.extract_strided_slice %13 {offsets = [0, 0], sizes = [8, 128], strides = [1, 1]} : vector<8x384xf32> to vector<8x128xf32>
    %17 = vector.extract_strided_slice %15 {offsets = [0, 0], sizes = [8, 128], strides = [1, 1]} : vector<8x384xf32> to vector<8x128xf32>
    %18 = arith.addf %16, %17 : vector<8x128xf32>
    %19 = arith.negf %18 : vector<8x128xf32>
    %20 = math.exp %19 : vector<8x128xf32>
    %cst_15 = arith.constant 1.000000e+00 : f32
    %21 = vector.broadcast %cst_15 : f32 to vector<8x128xf32>
    %22 = arith.addf %21, %20 : vector<8x128xf32>
    %23 = arith.divf %21, %22 : vector<8x128xf32>
    %24 = vector.extract_strided_slice %13 {offsets = [0, 128], sizes = [8, 128], strides = [1, 1]} : vector<8x384xf32> to vector<8x128xf32>
    %25 = vector.extract_strided_slice %15 {offsets = [0, 128], sizes = [8, 128], strides = [1, 1]} : vector<8x384xf32> to vector<8x128xf32>
    %26 = arith.addf %24, %25 : vector<8x128xf32>
    %27 = arith.negf %26 : vector<8x128xf32>
    %28 = math.exp %27 : vector<8x128xf32>
    %cst_16 = arith.constant 1.000000e+00 : f32
    %29 = vector.broadcast %cst_16 : f32 to vector<8x128xf32>
    %30 = arith.addf %29, %28 : vector<8x128xf32>
    %31 = arith.divf %29, %30 : vector<8x128xf32>
    %32 = vector.extract_strided_slice %13 {offsets = [0, 256], sizes = [8, 128], strides = [1, 1]} : vector<8x384xf32> to vector<8x128xf32>
    %33 = vector.extract_strided_slice %15 {offsets = [0, 256], sizes = [8, 128], strides = [1, 1]} : vector<8x384xf32> to vector<8x128xf32>
    %c0_17 = arith.constant 0 : index
    %c0_18 = arith.constant 0 : index
    %34 = vector.load %arg8[%c0_17, %c0_18] : memref<1x128xf32, #tpu.memory_space<vmem>>, vector<1x128xf32>
    %35 = vector.broadcast %34 : vector<1x128xf32> to vector<8x128xf32>
    %36 = arith.addf %33, %35 : vector<8x128xf32>
    %37 = arith.mulf %23, %36 : vector<8x128xf32>
    %38 = arith.addf %32, %37 : vector<8x128xf32>
    %39 = math.tanh %38 : vector<8x128xf32>
    %40 = vector.extract_strided_slice %31 {offsets = [0, 0], sizes = [8, 32], strides = [1, 1]} : vector<8x128xf32> to vector<8x32xf32>
    %cst_19 = arith.constant 1.000000e+00 : f32
    %41 = vector.broadcast %cst_19 : f32 to vector<8x32xf32>
    %42 = arith.subf %41, %40 : vector<8x32xf32>
    %43 = vector.extract_strided_slice %39 {offsets = [0, 0], sizes = [8, 32], strides = [1, 1]} : vector<8x128xf32> to vector<8x32xf32>
    %44 = arith.mulf %42, %43 : vector<8x32xf32>
    %45 = arith.mulf %40, %0 : vector<8x32xf32>
    %46 = arith.addf %44, %45 : vector<8x32xf32>
    %c0_20 = arith.constant 0 : index
    %c0_21 = arith.constant 0 : index
    %47 = vector.load %arg9[%c0_20, %c0_21] : memref<8x32xf32, #tpu.memory_space<vmem>>, vector<8x32xf32>
    tpu.vector_store %arg9[%c0_20, %c0_21], %46 {strides = array<i32>} : memref<8x32xf32, #tpu.memory_space<vmem>>, vector<8x32xf32>,
    return
  }
  func.func @transform_0(%arg0: i32) -> (i32, i32) {
    %c0_i32 = arith.constant 0 : i32
    %c0_i32_0 = arith.constant 0 : i32
    return %arg0, %c0_i32 : i32, i32
  }
  func.func @transform_1(%arg0: i32) -> (i32, i32) {
    %c0_i32 = arith.constant 0 : i32
    %c0_i32_0 = arith.constant 0 : i32
    return %arg0, %c0_i32 : i32, i32
  }
  func.func @transform_2(%arg0: i32) -> (i32, i32) {
    %c0_i32 = arith.constant 0 : i32
    %c0_i32_0 = arith.constant 0 : i32
    return %arg0, %c0_i32 : i32, i32
  }
  func.func @transform_3(%arg0: i32) -> (i32, i32) {
    %c0_i32 = arith.constant 0 : i32
    %c0_i32_0 = arith.constant 0 : i32
    %c0_i32_1 = arith.constant 0 : i32
    return %c0_i32, %c0_i32_0 : i32, i32
  }
  func.func @transform_4(%arg0: i32) -> (i32, i32) {
    %c0_i32 = arith.constant 0 : i32
    %c0_i32_0 = arith.constant 0 : i32
    %c0_i32_1 = arith.constant 0 : i32
    return %c0_i32, %c0_i32_0 : i32, i32
  }
  func.func @transform_5(%arg0: i32) -> (i32, i32) {
    %c0_i32 = arith.constant 0 : i32
    %c0_i32_0 = arith.constant 0 : i32
    %c0_i32_1 = arith.constant 0 : i32
    return %c0_i32, %c0_i32_0 : i32, i32
  }
  func.func @transform_6(%arg0: i32) -> (i32, i32) {
    %c0_i32 = arith.constant 0 : i32
    %c0_i32_0 = arith.constant 0 : i32
    %c0_i32_1 = arith.constant 0 : i32
    return %c0_i32, %c0_i32_0 : i32, i32
  }
  func.func @transform_7(%arg0: i32) -> (i32, i32) {
    %c0_i32 = arith.constant 0 : i32
    %c0_i32_0 = arith.constant 0 : i32
    %c0_i32_1 = arith.constant 0 : i32
    return %c0_i32, %c0_i32_0 : i32, i32
  }
  func.func @transform_8(%arg0: i32) -> (i32, i32) {
    %c0_i32 = arith.constant 0 : i32
    %c0_i32_0 = arith.constant 0 : i32
    return %arg0, %c0_i32 : i32, i32
  }
}

</mosaic_0001>

<llo_original>
// kernel: users_history_updater.1
$region0: #{users_history_updater.1}
  #allocation0 [shape = 'u32[]', space=smem, size = 0x4, offset = 0x4, fixed_abs, tag = 'smem constant byte address 0x4 - core index']
  #allocation1 [shape = 'u32[144,128]{1,0:T(1,128)}', space=vmem, size = 0x12000, scoped, tag = 'internal scratch']
  %s0 = inlined_call_operand.hbm [shape: f32[8,32], index: 0, kind: input, shape index: {}, may-alias: {0,8}]
  %s1 = inlined_call_operand.vmem [shape: f32[8,32], index: 1, kind: input, shape index: {}]
  %s2 = inlined_call_operand.vmem [shape: f32[8,16], index: 2, kind: input, shape index: {}]
  %s3 = inlined_call_operand.hbm [shape: bf16[32,384], index: 3, kind: input, shape index: {}]
  %s4 = inlined_call_operand.hbm [shape: bf16[16,384], index: 4, kind: input, shape index: {}]
  %s5 = inlined_call_operand.hbm [shape: bf16[32,384], index: 5, kind: input, shape index: {}]
  %s6 = inlined_call_operand.vmem [shape: f32[1,384], index: 6, kind: input, shape index: {}]
  %s7 = inlined_call_operand.vmem [shape: f32[1,128], index: 7, kind: input, shape index: {}]
  %s8 = inlined_call_operand.hbm [shape: f32[8,32], index: 8, kind: output, shape index: {}, may-alias: {0,8}]
  %s9 = sld [smem:[#allocation0]]
  $region58: #{users_history_updater.1} parent=0
    _
  %s11 = ssub.s32 1, %s9
  %s12 = scalar_select 0, %s11, %s9
  $region1: #{users_history_updater.1} parent=0
    #allocation2 [shape = 'u8[4096]{0}', space=vmem, size = 0x1000, scoped, tag = 'input window, operand 0, single buffered']
    #allocation3 [shape = 's32[1]{0}', space=sflag, size = 0x4, scoped, tag = 'scoped memory for users_history_updater.1']
    #allocation4 [shape = 's32[1]{0}', space=sflag, size = 0x4, scoped, tag = 'scoped memory for users_history_updater.1']
    #allocation5 [shape = 'u8[24576]{0}', space=vmem, size = 0x6000, scoped, tag = 'input window, operand 3, single buffered']
    #allocation6 [shape = 's32[1]{0}', space=sflag, size = 0x4, scoped, tag = 'scoped memory for users_history_updater.1']
    #allocation7 [shape = 'u8[12288]{0}', space=vmem, size = 0x3000, scoped, tag = 'input window, operand 4, single buffered']
    #allocation8 [shape = 'u8[24576]{0}', space=vmem, size = 0x6000, scoped, tag = 'input window, operand 5, single buffered']
    #allocation9 [shape = 's32[1]{0}', space=sflag, size = 0x4, scoped, tag = 'scoped memory for users_history_updater.1']
    #allocation10 [shape = 'u8[4096]{0}', space=vmem, size = 0x1000, scoped, tag = 'output window, operand 0, single buffered']
    %13 = vsyncpa [#allocation3], 0
    %14 = vsyncpa [#allocation6], 0
    %15 = vsyncpa [#allocation9], 0
    %16 = vsyncpa [#allocation4], 0
    // Predicated region
    $region2: #{users_history_updater.1} parent=1 // pred_check
      _
    $region3: #{users_history_updater.1} parent=1 // pred_check_branch
      %18 = sbr.rel (0) target = $region5
    $region4: #{users_history_updater.1} parent=1 // pred_region
      %s20 = ssub.s32 128, 128
      %21 = vsyncadd [#allocation3], %s20
      %s23 = sshll.u32 [#allocation2], 4
      %s24 = int_to_ptr.vmem [resolvable:$true] %s23
      %26 = dma.hbm_to_vmem [thread:$0]  %s0, 128, %s24, [#allocation3]
    $region5: #{users_history_updater.1} parent=1 // pred_fallthru
      _
    // Predicated region
    $region6: #{users_history_updater.1} parent=1 // pred_check
      _
    $region7: #{users_history_updater.1} parent=1 // pred_check_branch
      %28 = sbr.rel (0) target = $region9
    $region8: #{users_history_updater.1} parent=1 // pred_region
      _
    $region9: #{users_history_updater.1} parent=1 // pred_fallthru
      _
    // Predicated region
    $region10: #{users_history_updater.1} parent=1 // pred_check
      _
    $region11: #{users_history_updater.1} parent=1 // pred_check_branch
      %30 = sbr.rel (0) target = $region13
    $region12: #{users_history_updater.1} parent=1 // pred_region
      _
    $region13: #{users_history_updater.1} parent=1 // pred_fallthru
      _
    // Predicated region
    $region14: #{users_history_updater.1} parent=1 // pred_check
      _
    $region15: #{users_history_updater.1} parent=1 // pred_check_branch
      %32 = sbr.rel (0) target = $region17
    $region16: #{users_history_updater.1} parent=1 // pred_region
      %s34 = ssub.s32 768, 768
      %35 = vsyncadd [#allocation6], %s34
      %s36 = sshll.u32 [#allocation5], 4
      %s37 = int_to_ptr.vmem [resolvable:$true] %s36
      %42 = dma.hbm_to_vmem [thread:$0]  %s3, 768, %s37, [#allocation6], 192, 192, 12
    $region17: #{users_history_updater.1} parent=1 // pred_fallthru
      _
    // Predicated region
    $region18: #{users_history_updater.1} parent=1 // pred_check
      _
    $region19: #{users_history_updater.1} parent=1 // pred_check_branch
      %44 = sbr.rel (0) target = $region21
    $region20: #{users_history_updater.1} parent=1 // pred_region
      %s46 = ssub.s32 384, 384
      %47 = vsyncadd [#allocation6], %s46
      %s48 = sshll.u32 [#allocation7], 4
      %s49 = int_to_ptr.vmem [resolvable:$true] %s48
      %54 = dma.hbm_to_vmem [thread:$0]  %s4, 384, %s49, [#allocation6], 192, 192, 12
    $region21: #{users_history_updater.1} parent=1 // pred_fallthru
      _
    // Predicated region
    $region22: #{users_history_updater.1} parent=1 // pred_check
      _
    $region23: #{users_history_updater.1} parent=1 // pred_check_branch
      %56 = sbr.rel (0) target = $region25
    $region24: #{users_history_updater.1} parent=1 // pred_region
      %s58 = ssub.s32 768, 768
      %59 = vsyncadd [#allocation9], %s58
      %s60 = sshll.u32 [#allocation8], 4
      %s61 = int_to_ptr.vmem [resolvable:$true] %s60
      %66 = dma.hbm_to_vmem [thread:$0]  %s5, 768, %s61, [#allocation9], 192, 192, 12
    $region25: #{users_history_updater.1} parent=1 // pred_fallthru
      _
    // Predicated region
    $region26: #{users_history_updater.1} parent=1 // pred_check
      _
    $region27: #{users_history_updater.1} parent=1 // pred_check_branch
      %68 = sbr.rel (0) target = $region29
    $region28: #{users_history_updater.1} parent=1 // pred_region
      _
    $region29: #{users_history_updater.1} parent=1 // pred_fallthru
      _
    // Predicated region
    $region30: #{users_history_updater.1} parent=1 // pred_check
      _
    $region31: #{users_history_updater.1} parent=1 // pred_check_branch
      %70 = sbr.rel (0) target = $region33
    $region32: #{users_history_updater.1} parent=1 // pred_region
      _
    $region33: #{users_history_updater.1} parent=1 // pred_fallthru
      _
    // Predicated region
    $region34: #{users_history_updater.1} parent=1 // pred_check
      _
    $region35: #{users_history_updater.1} parent=1 // pred_check_branch
      %72 = sbr.rel (0) target = $region37
    $region36: #{users_history_updater.1} parent=1 // pred_region
      %73 = dma.done [#allocation3], 128
    $region37: #{users_history_updater.1} parent=1 // pred_fallthru
      _
    // Predicated region
    $region38: #{users_history_updater.1} parent=1 // pred_check
      _
    $region39: #{users_history_updater.1} parent=1 // pred_check_branch
      %75 = sbr.rel (0) target = $region41
    $region40: #{users_history_updater.1} parent=1 // pred_region
      %76 = dma.done [#allocation6], 768
    $region41: #{users_history_updater.1} parent=1 // pred_fallthru
      _
    // Predicated region
    $region42: #{users_history_updater.1} parent=1 // pred_check
      _
    $region43: #{users_history_updater.1} parent=1 // pred_check_branch
      %78 = sbr.rel (0) target = $region45
    $region44: #{users_history_updater.1} parent=1 // pred_region
      %79 = dma.done [#allocation6], 384
    $region45: #{users_history_updater.1} parent=1 // pred_fallthru
      _
    // Predicated region
    $region46: #{users_history_updater.1} parent=1 // pred_check
      _
    $region47: #{users_history_updater.1} parent=1 // pred_check_branch
      %81 = sbr.rel (0) target = $region49
    $region48: #{users_history_updater.1} parent=1 // pred_region
      %82 = dma.done [#allocation9], 768
    $region49: #{users_history_updater.1} parent=1 // pred_fallthru
      _
    %v84 = vld [vmem:[#allocation2] sm:$0xff]
    %v85 = vpack.c.bf16 %v84, %v84
    %v86 = vld [vmem:[%s1] sm:$0xff]
    %v87 = vpack.c.bf16 %v86, %v86
    %v88 = vld [vmem:[%s2] sm:$0xff]
    %v89 = vpack.c.bf16 %v88, %v88
    %v90 = vld [vmem:[#allocation5] sm:$0xff]
    %v91 = vld [vmem:[#allocation5 + $0x8] sm:$0xf]
    %v92 = vld [vmem:[#allocation5 + $0xc] sm:$0xff]
    %v93 = vld [vmem:[#allocation5 + $0x14] sm:$0xf]
    %v94 = vld [vmem:[#allocation5 + $0x18] sm:$0xff]
    %v95 = vld [vmem:[#allocation5 + $0x20] sm:$0xf]
    %v96 = vld [vmem:[#allocation5 + $0x24] sm:$0xff]
    %v97 = vld [vmem:[#allocation5 + $0x2c] sm:$0xf]
    %v98 = vld [vmem:[#allocation7] sm:$0xff]
    %v99 = vld [vmem:[#allocation7 + $0x8] sm:$0xf]
    %v100 = vld [vmem:[#allocation7 + $0xc] sm:$0xff]
    %v101 = vld [vmem:[#allocation7 + $0x14] sm:$0xf]
    %v106 = vunpack.c.l.b16 %v98
    %v107 = vunpack.c.h.b16 %v98
    %v108 = vunpack.c.l.b16 %v99
    %v109 = vunpack.c.l.b16 %v100
    %v110 = vunpack.c.h.b16 %v100
    %v111 = vunpack.c.l.b16 %v101
    %v112 = vpack.c.b16 %v109, %v106
    %v113 = vpack.c.b16 %v110, %v107
    %v114 = vpack.c.b16 %v111, %v108
    %vm118 = vcmask 130048
    %v120 = vsel %vm118, %v89, 0
    %122 = vmatprep.subr.bf16.mxu0 0
    %123 = vmatpush1.bf16.msra.mxu0 0
    %124 = vmatprep.subr.bf16.mxu0 0
    %125 = vmatpush1.bf16.msra.mxu0 0
    %126 = vmatprep.subr.bf16.mxu0 0
    %127 = vmatpush1.bf16.msra.mxu0 0
    %128 = vmatprep.subr.bf16.mxu0 0
    %129 = vmatpush1.bf16.msra.mxu0 0
    %130 = vmatprep.subr.bf16.mxu0 0
    %131 = vmatpush1.bf16.msra.mxu0 0
    %132 = vmatprep.subr.bf16.mxu0 0
    %133 = vmatpush1.bf16.msra.mxu0 0
    %134 = vmatprep.subr.bf16.mxu0 0
    %135 = vmatpush1.bf16.msra.mxu0 0
    %136 = vmatprep.subr.bf16.mxu0 %v113
    %137 = vmatpush1.bf16.msra.mxu0 %v112
    %138 = vmatprep.subr.bf16.mxu0 0
    %139 = vmatpush2.bf16.msra.mxu0 0
    %140 = vmatprep.subr.bf16.mxu0 0
    %141 = vmatpush2.bf16.msra.mxu0 0
    %142 = vmatprep.subr.bf16.mxu0 0
    %143 = vmatpush2.bf16.msra.mxu0 0
    %144 = vmatprep.subr.bf16.mxu0 0
    %145 = vmatpush2.bf16.msra.mxu0 0
    %146 = vmatprep.subr.bf16.mxu0 0
    %147 = vmatpush2.bf16.msra.mxu0 0
    %148 = vmatprep.subr.bf16.mxu0 0
    %149 = vmatpush2.bf16.msra.mxu0 0
    %150 = vmatprep.subr.bf16.mxu0 0
    %151 = vmatpush2.bf16.msra.mxu0 0
    %152 = vmatprep.subr.bf16.mxu0 0
    %153 = vmatpush2.bf16.msra.mxu0 0
    %154 = vmatprep.mubr.bf16.mxu0 0
    %155 = vmatmul.mubr.bf16.gmra.mxu0 %v120
    %v156 = vpop.f32.mrf.mxu0
    %v157 = vadd.f32 0.0, %v156
    %v158 = vpop.f32.mrf.mxu0
    %v159 = vadd.f32 0.0, %v158
    %v160 = vpop.f32.mrf.mxu0
    %v161 = vpop.f32.mrf.mxu0
    %162 = vdwg.mxu0
    %163 = vmatprep.subr.bf16.mxu0 0
    %164 = vmatpush1.bf16.msra.mxu0 0
    %165 = vmatprep.subr.bf16.mxu0 0
    %166 = vmatpush1.bf16.msra.mxu0 0
    %167 = vmatprep.subr.bf16.mxu0 0
    %168 = vmatpush1.bf16.msra.mxu0 0
    %169 = vmatprep.subr.bf16.mxu0 0
    %170 = vmatpush1.bf16.msra.mxu0 0
    %171 = vmatprep.subr.bf16.mxu0 0
    %172 = vmatpush1.bf16.msra.mxu0 0
    %173 = vmatprep.subr.bf16.mxu0 0
    %174 = vmatpush1.bf16.msra.mxu0 0
    %175 = vmatprep.subr.bf16.mxu0 0
    %176 = vmatpush1.bf16.msra.mxu0 0
    %177 = vmatprep.subr.bf16.mxu0 0
    %178 = vmatpush1.bf16.msra.mxu0 %v114
    %179 = vmatprep.subr.bf16.mxu0 0
    %180 = vmatpush2.bf16.msra.mxu0 0
    %181 = vmatprep.subr.bf16.mxu0 0
    %182 = vmatpush2.bf16.msra.mxu0 0
    %183 = vmatprep.subr.bf16.mxu0 0
    %184 = vmatpush2.bf16.msra.mxu0 0
    %185 = vmatprep.subr.bf16.mxu0 0
    %186 = vmatpush2.bf16.msra.mxu0 0
    %187 = vmatprep.subr.bf16.mxu0 0
    %188 = vmatpush2.bf16.msra.mxu0 0
    %189 = vmatprep.subr.bf16.mxu0 0
    %190 = vmatpush2.bf16.msra.mxu0 0
    %191 = vmatprep.subr.bf16.mxu0 0
    %192 = vmatpush2.bf16.msra.mxu0 0
    %193 = vmatprep.subr.bf16.mxu0 0
    %194 = vmatpush2.bf16.msra.mxu0 0
    %195 = vmatprep.mubr.bf16.mxu0 0
    %196 = vmatmul.mubr.bf16.gmra.mxu0 %v120
    %v197 = vpop.f32.mrf.mxu0
    %v198 = vadd.f32 0.0, %v197
    %v199 = vpop.f32.mrf.mxu0
    %v200 = vpop.f32.mrf.mxu0
    %v201 = vpop.f32.mrf.mxu0
    %202 = vdwg.mxu0
    %v211 = vunpack.c.l.b16 %v90
    %v212 = vunpack.c.h.b16 %v90
    %v213 = vunpack.c.l.b16 %v91
    %v214 = vunpack.c.l.b16 %v92
    %v215 = vunpack.c.h.b16 %v92
    %v216 = vunpack.c.l.b16 %v93
    %v217 = vunpack.c.l.b16 %v94
    %v218 = vunpack.c.h.b16 %v94
    %v219 = vunpack.c.l.b16 %v95
    %v220 = vunpack.c.l.b16 %v96
    %v221 = vunpack.c.h.b16 %v96
    %v222 = vunpack.c.l.b16 %v97
    %v223 = vpack.c.b16 %v214, %v211
    %v224 = vpack.c.b16 %v215, %v212
    %v225 = vpack.c.b16 %v216, %v213
    %v226 = vpack.c.b16 %v220, %v217
    %v227 = vpack.c.b16 %v221, %v218
    %v228 = vpack.c.b16 %v222, %v219
    %vm235 = vcmask 261120
    %v237 = vsel %vm235, %v87, 0
    %239 = vmatprep.subr.bf16.mxu0 0
    %240 = vmatpush1.bf16.msra.mxu0 0
    %241 = vmatprep.subr.bf16.mxu0 0
    %242 = vmatpush1.bf16.msra.mxu0 0
    %243 = vmatprep.subr.bf16.mxu0 0
    %244 = vmatpush1.bf16.msra.mxu0 0
    %245 = vmatprep.subr.bf16.mxu0 0
    %246 = vmatpush1.bf16.msra.mxu0 0
    %247 = vmatprep.subr.bf16.mxu0 0
    %248 = vmatpush1.bf16.msra.mxu0 0
    %249 = vmatprep.subr.bf16.mxu0 0
    %250 = vmatpush1.bf16.msra.mxu0 0
    %251 = vmatprep.subr.bf16.mxu0 %v227
    %252 = vmatpush1.bf16.msra.mxu0 %v226
    %253 = vmatprep.subr.bf16.mxu0 %v224
    %254 = vmatpush1.bf16.msra.mxu0 %v223
    %255 = vmatprep.subr.bf16.mxu0 0
    %256 = vmatpush2.bf16.msra.mxu0 0
    %257 = vmatprep.subr.bf16.mxu0 0
    %258 = vmatpush2.bf16.msra.mxu0 0
    %259 = vmatprep.subr.bf16.mxu0 0
    %260 = vmatpush2.bf16.msra.mxu0 0
    %261 = vmatprep.subr.bf16.mxu0 0
    %262 = vmatpush2.bf16.msra.mxu0 0
    %263 = vmatprep.subr.bf16.mxu0 0
    %264 = vmatpush2.bf16.msra.mxu0 0
    %265 = vmatprep.subr.bf16.mxu0 0
    %266 = vmatpush2.bf16.msra.mxu0 0
    %267 = vmatprep.subr.bf16.mxu0 0
    %268 = vmatpush2.bf16.msra.mxu0 0
    %269 = vmatprep.subr.bf16.mxu0 0
    %270 = vmatpush2.bf16.msra.mxu0 0
    %271 = vmatprep.mubr.bf16.mxu0 0
    %272 = vmatmul.mubr.bf16.gmra.mxu0 %v237
    %v273 = vpop.f32.mrf.mxu0
    %v274 = vadd.f32 %v157, %v273
    %v275 = vpop.f32.mrf.mxu0
    %v276 = vadd.f32 %v159, %v275
    %v277 = vpop.f32.mrf.mxu0
    %v278 = vpop.f32.mrf.mxu0
    %279 = vdwg.mxu0
    %280 = vmatprep.subr.bf16.mxu0 0
    %281 = vmatpush1.bf16.msra.mxu0 0
    %282 = vmatprep.subr.bf16.mxu0 0
    %283 = vmatpush1.bf16.msra.mxu0 0
    %284 = vmatprep.subr.bf16.mxu0 0
    %285 = vmatpush1.bf16.msra.mxu0 0
    %286 = vmatprep.subr.bf16.mxu0 0
    %287 = vmatpush1.bf16.msra.mxu0 0
    %288 = vmatprep.subr.bf16.mxu0 0
    %289 = vmatpush1.bf16.msra.mxu0 0
    %290 = vmatprep.subr.bf16.mxu0 0
    %291 = vmatpush1.bf16.msra.mxu0 0
    %292 = vmatprep.subr.bf16.mxu0 0
    %293 = vmatpush1.bf16.msra.mxu0 %v228
    %294 = vmatprep.subr.bf16.mxu0 0
    %295 = vmatpush1.bf16.msra.mxu0 %v225
    %296 = vmatprep.subr.bf16.mxu0 0
    %297 = vmatpush2.bf16.msra.mxu0 0
    %298 = vmatprep.subr.bf16.mxu0 0
    %299 = vmatpush2.bf16.msra.mxu0 0
    %300 = vmatprep.subr.bf16.mxu0 0
    %301 = vmatpush2.bf16.msra.mxu0 0
    %302 = vmatprep.subr.bf16.mxu0 0
    %303 = vmatpush2.bf16.msra.mxu0 0
    %304 = vmatprep.subr.bf16.mxu0 0
    %305 = vmatpush2.bf16.msra.mxu0 0
    %306 = vmatprep.subr.bf16.mxu0 0
    %307 = vmatpush2.bf16.msra.mxu0 0
    %308 = vmatprep.subr.bf16.mxu0 0
    %309 = vmatpush2.bf16.msra.mxu0 0
    %310 = vmatprep.subr.bf16.mxu0 0
    %311 = vmatpush2.bf16.msra.mxu0 0
    %312 = vmatprep.mubr.bf16.mxu0 0
    %313 = vmatmul.mubr.bf16.gmra.mxu0 %v237
    %v314 = vpop.f32.mrf.mxu0
    %v315 = vadd.f32 %v198, %v314
    %v316 = vpop.f32.mrf.mxu0
    %v317 = vpop.f32.mrf.mxu0
    %v318 = vpop.f32.mrf.mxu0
    %319 = vdwg.mxu0
    %v320 = vld [vmem:[%s6] sm:$0x7]
    %v322 = vlaneseq
    %v323 = vshrl.u32 %v322, 7
    %v324 = vsub.s32 0, %v323
    %v325 = vrot.slane %v320, %v324
    %v326 = vlaneseq
    %v327 = vshrl.u32 %v326, 7
    %v328 = vsub.s32 1, %v327
    %v329 = vrot.slane %v320, %v328
    %v330 = vlaneseq
    %v331 = vshrl.u32 %v330, 7
    %v332 = vsub.s32 2, %v331
    %v333 = vrot.slane %v320, %v332
    %v337 = vadd.f32 %v274, %v325
    %v338 = vadd.f32 %v276, %v329
    %v339 = vadd.f32 %v315, %v333
    %v340 = vld [vmem:[#allocation8] sm:$0xff]
    %v341 = vld [vmem:[#allocation8 + $0x8] sm:$0xf]
    %v342 = vld [vmem:[#allocation8 + $0xc] sm:$0xff]
    %v343 = vld [vmem:[#allocation8 + $0x14] sm:$0xf]
    %v344 = vld [vmem:[#allocation8 + $0x18] sm:$0xff]
    %v345 = vld [vmem:[#allocation8 + $0x20] sm:$0xf]
    %v346 = vld [vmem:[#allocation8 + $0x24] sm:$0xff]
    %v347 = vld [vmem:[#allocation8 + $0x2c] sm:$0xf]
    %v356 = vunpack.c.l.b16 %v340
    %v357 = vunpack.c.h.b16 %v340
    %v358 = vunpack.c.l.b16 %v341
    %v359 = vunpack.c.l.b16 %v342
    %v360 = vunpack.c.h.b16 %v342
    %v361 = vunpack.c.l.b16 %v343
    %v362 = vunpack.c.l.b16 %v344
    %v363 = vunpack.c.h.b16 %v344
    %v364 = vunpack.c.l.b16 %v345
    %v365 = vunpack.c.l.b16 %v346
    %v366 = vunpack.c.h.b16 %v346
    %v367 = vunpack.c.l.b16 %v347
    %v368 = vpack.c.b16 %v359, %v356
    %v369 = vpack.c.b16 %v360, %v357
    %v370 = vpack.c.b16 %v361, %v358
    %v371 = vpack.c.b16 %v365, %v362
    %v372 = vpack.c.b16 %v366, %v363
    %v373 = vpack.c.b16 %v367, %v364
    %v381 = vsel %vm235, %v85, 0
    %383 = vmatprep.subr.bf16.mxu0 0
    %384 = vmatpush1.bf16.msra.mxu0 0
    %385 = vmatprep.subr.bf16.mxu0 0
    %386 = vmatpush1.bf16.msra.mxu0 0
    %387 = vmatprep.subr.bf16.mxu0 0
    %388 = vmatpush1.bf16.msra.mxu0 0
    %389 = vmatprep.subr.bf16.mxu0 0
    %390 = vmatpush1.bf16.msra.mxu0 0
    %391 = vmatprep.subr.bf16.mxu0 0
    %392 = vmatpush1.bf16.msra.mxu0 0
    %393 = vmatprep.subr.bf16.mxu0 0
    %394 = vmatpush1.bf16.msra.mxu0 0
    %395 = vmatprep.subr.bf16.mxu0 %v372
    %396 = vmatpush1.bf16.msra.mxu0 %v371
    %397 = vmatprep.subr.bf16.mxu0 %v369
    %398 = vmatpush1.bf16.msra.mxu0 %v368
    %399 = vmatprep.subr.bf16.mxu0 0
    %400 = vmatpush2.bf16.msra.mxu0 0
    %401 = vmatprep.subr.bf16.mxu0 0
    %402 = vmatpush2.bf16.msra.mxu0 0
    %403 = vmatprep.subr.bf16.mxu0 0
    %404 = vmatpush2.bf16.msra.mxu0 0
    %405 = vmatprep.subr.bf16.mxu0 0
    %406 = vmatpush2.bf16.msra.mxu0 0
    %407 = vmatprep.subr.bf16.mxu0 0
    %408 = vmatpush2.bf16.msra.mxu0 0
    %409 = vmatprep.subr.bf16.mxu0 0
    %410 = vmatpush2.bf16.msra.mxu0 0
    %411 = vmatprep.subr.bf16.mxu0 0
    %412 = vmatpush2.bf16.msra.mxu0 0
    %413 = vmatprep.subr.bf16.mxu0 0
    %414 = vmatpush2.bf16.msra.mxu0 0
    %415 = vmatprep.mubr.bf16.mxu0 0
    %416 = vmatmul.mubr.bf16.gmra.mxu0 %v381
    %v417 = vpop.f32.mrf.mxu0
    %v418 = vadd.f32 0.0, %v417
    %v419 = vpop.f32.mrf.mxu0
    %v420 = vadd.f32 0.0, %v419
    %v421 = vpop.f32.mrf.mxu0
    %v422 = vpop.f32.mrf.mxu0
    %423 = vdwg.mxu0
    %424 = vmatprep.subr.bf16.mxu0 0
    %425 = vmatpush1.bf16.msra.mxu0 0
    %426 = vmatprep.subr.bf16.mxu0 0
    %427 = vmatpush1.bf16.msra.mxu0 0
    %428 = vmatprep.subr.bf16.mxu0 0
    %429 = vmatpush1.bf16.msra.mxu0 0
    %430 = vmatprep.subr.bf16.mxu0 0
    %431 = vmatpush1.bf16.msra.mxu0 0
    %432 = vmatprep.subr.bf16.mxu0 0
    %433 = vmatpush1.bf16.msra.mxu0 0
    %434 = vmatprep.subr.bf16.mxu0 0
    %435 = vmatpush1.bf16.msra.mxu0 0
    %436 = vmatprep.subr.bf16.mxu0 0
    %437 = vmatpush1.bf16.msra.mxu0 %v373
    %438 = vmatprep.subr.bf16.mxu0 0
    %439 = vmatpush1.bf16.msra.mxu0 %v370
    %440 = vmatprep.subr.bf16.mxu0 0
    %441 = vmatpush2.bf16.msra.mxu0 0
    %442 = vmatprep.subr.bf16.mxu0 0
    %443 = vmatpush2.bf16.msra.mxu0 0
    %444 = vmatprep.subr.bf16.mxu0 0
    %445 = vmatpush2.bf16.msra.mxu0 0
    %446 = vmatprep.subr.bf16.mxu0 0
    %447 = vmatpush2.bf16.msra.mxu0 0
    %448 = vmatprep.subr.bf16.mxu0 0
    %449 = vmatpush2.bf16.msra.mxu0 0
    %450 = vmatprep.subr.bf16.mxu0 0
    %451 = vmatpush2.bf16.msra.mxu0 0
    %452 = vmatprep.subr.bf16.mxu0 0
    %453 = vmatpush2.bf16.msra.mxu0 0
    %454 = vmatprep.subr.bf16.mxu0 0
    %455 = vmatpush2.bf16.msra.mxu0 0
    %456 = vmatprep.mubr.bf16.mxu0 0
    %457 = vmatmul.mubr.bf16.gmra.mxu0 %v381
    %v458 = vpop.f32.mrf.mxu0
    %v459 = vadd.f32 0.0, %v458
    %v460 = vpop.f32.mrf.mxu0
    %v461 = vpop.f32.mrf.mxu0
    %v462 = vpop.f32.mrf.mxu0
    %463 = vdwg.mxu0
    %v464 = vadd.f32 %v337, %v418
    %v465 = vxor.u32 %v464, 2147483648
    %v466 = vmul.f32 %v465, 1.442695
    %v467 = vpow.pop %v466
    %v468 = vadd.f32 %v467, 1.0
    %v469 = vrcp.pop %v468
    %v470 = vmul.f32 1.0, %v469
    %v471 = vadd.f32 %v338, %v420
    %v472 = vxor.u32 %v471, 2147483648
    %v473 = vmul.f32 %v472, 1.442695
    %v474 = vpow.pop %v473
    %v475 = vadd.f32 %v474, 1.0
    %v476 = vrcp.pop %v475
    %v477 = vmul.f32 1.0, %v476
    %v478 = vld [vmem:[%s7] sm:$0x1]
    %v480 = vlaneseq
    %v481 = vshrl.u32 %v480, 7
    %v482 = vsub.s32 0, %v481
    %v483 = vrot.slane %v478, %v482
    %v485 = vadd.f32 %v459, %v483
    %v486 = vmul.f32 %v470, %v485
    %v487 = vadd.f32 %v339, %v486
    %v488 = vtanh.pop %v487
    %v489 = vsub.f32 1.0, %v477
    %v490 = vmul.f32 %v489, %v488
    %v491 = vmul.f32 %v477, %v84
    %v492 = vadd.f32 %v490, %v491
    %493 = vst.msk [vmem:[#allocation10] sm:$0xff] %vm235, %v492
    // Predicated region
    $region50: #{users_history_updater.1} parent=1 // pred_check
      _
    $region51: #{users_history_updater.1} parent=1 // pred_check_branch
      %495 = sbr.rel (0) target = $region53
    $region52: #{users_history_updater.1} parent=1 // pred_region
      %s497 = ssub.s32 128, 128
      %498 = vsyncadd [#allocation4], %s497
      %s500 = sshll.u32 [#allocation10], 4
      %s501 = int_to_ptr.vmem [resolvable:$true] %s500
      %503 = dma.vmem_to_hbm [thread:$0]  %s501, 128, %s8, [#allocation4]
    $region53: #{users_history_updater.1} parent=1 // pred_fallthru
      _
    // Predicated region
    $region54: #{users_history_updater.1} parent=1 // pred_check
      _
    $region55: #{users_history_updater.1} parent=1 // pred_check_branch
      %505 = sbr.rel (0) target = $region57
    $region56: #{users_history_updater.1} parent=1 // pred_region
      %506 = dma.done [#allocation4], 128
    $region57: #{users_history_updater.1} parent=1 // pred_fallthru
      _
    %507 = vsyncpa [#allocation3], 1
    %508 = vsyncpa [#allocation6], 1
    %509 = vsyncpa [#allocation9], 1
    %510 = vsyncpa [#allocation4], 1

</llo_original>
